<compile_context>
chip_gen: v7x
topology: tpu7x:2x2x1
jax: 0.10.0
libtpu: 0.0.40
codegen_flags: <defaults>
</compile_context>

<pallas_src>
import functools

import jax
import jax.numpy as jnp
from jax.experimental import pallas as pl
from jax.experimental.pallas import tpu as pltpu


def _round_up(x, m):
    return (x + m - 1) // m * m


# ----------------------------------------------------------------------------
# Pallas kernel: fused depthwise 3x3 + pointwise 1x1 for one (batch, row-block)
# ----------------------------------------------------------------------------
def _dsconv_kernel(xt_ref, xm_ref, xb_ref, wf_ref, bf_ref, o_ref,
                   *, TH, W, C, Cout):
    # xt_ref: (1,  W, C)  bf16  row  i*TH - 1  (clamped; zero-masked when i == 0)
    # xm_ref: (TH, W, C)  bf16  rows [i*TH, i*TH + TH)
    # xb_ref: (1,  W, C)  bf16  row  (i+1)*TH (clamped; zero-masked when i == last)
    # wf_ref: (9*C, Cout) bf16  folded taps  wf[(3*dy+dx)*C + c, o] = dw[dy,dx,c]*pw[c,o]
    # bf_ref: (1, Cout)   f32   folded bias  db @ pw + pb
    # o_ref : (TH, W, Cout) f32
    i = pl.program_id(1)
    nh = pl.num_programs(1)
    dt = xm_ref.dtype

    # Vertical halo rows: select (not multiply) so NaN/Inf in the clamped
    # boundary row cannot leak into the "zero padding".
    zero_row = jnp.zeros((1, W, C), dt)
    top = jnp.where(i > 0, xt_ref[...], zero_row)
    bot = jnp.where(i < nh - 1, xb_ref[...], zero_row)
    rows = jnp.concatenate([top, xm_ref[...], bot], axis=0)        # (TH+2, W, C)

    # Horizontal (dx = -1 / +1) shifts with the conv's zero column built in.
    zcol = jnp.zeros((TH + 2, 1, C), dt)
    left = jnp.concatenate([zcol, rows[:, :W - 1, :]], axis=1)     # x[.., w-1, .]
    right = jnp.concatenate([rows[:, 1:, :], zcol], axis=1)        # x[.., w+1, .]

    # Pack the 3 dx taps, then the 3 dy taps, along the channel (lane) axis:
    #   xs[h, w, (3*dy + dx)*C + c] = x_pad[base + h + dy, w + dx, c]
    ext = jnp.concatenate([left, rows, right], axis=2)             # (TH+2, W, 3C)
    xs = jnp.concatenate([ext[0:TH], ext[1:TH + 1], ext[2:TH + 2]],
                         axis=2)                                    # (TH, W, 9C)
    xs = xs.reshape(TH * W, 9 * C)

    # One MXU pass with K = 9*C (f32 accumulation), folded bias added once.
    acc = jnp.dot(xs, wf_ref[...], preferred_element_type=jnp.float32)
    acc = acc + bf_ref[...]
    o_ref[...] = acc.reshape(TH, W, Cout).astype(o_ref.dtype)


# ----------------------------------------------------------------------------
# NHWC wrapper: tiling, weight folding, VMEM budgeting
# ----------------------------------------------------------------------------
def depthwise_separable_conv_nhwc(x, dw, db, pw, pb, *, tile_h=None):
    """x: (N,H,W,C) f32.  dw: (9,C) taps row-major (dw[k,c] = W_dw[c,0,k//3,k%3]),
    db: (C,), pw: (C,Cout) (pw[c,o] = W_pw[o,c,0,0]), pb: (Cout,)."""
    N, H, W, C = x.shape
    Cout = pw.shape[1]

    # bf16 activations: halves input HBM traffic; accumulation stays f32.
    x = x.astype(jnp.bfloat16)

    # Fold depthwise into the pointwise matmul (linearity), K packed as 9*C:
    #   out[p,o] = sum_{k,c} x_shift_k[p,c] * dw[k,c] * pw[c,o] + (db@pw + pb)[o]
    wf = (dw[:, :, None] * pw[None, :, :]).reshape(9 * C, Cout).astype(jnp.bfloat16)
    bf = (db.astype(jnp.float32) @ pw.astype(jnp.float32)
          + pb.astype(jnp.float32)).reshape(1, Cout)

    # Generation-aware VMEM budget (v7x: 64 MiB/TC, v5e/v6e: 128 MiB).
    try:
        vmem_cap = int(pltpu.get_tpu_info().vmem_capacity_bytes)
    except Exception:
        vmem_cap = 64 * 1024 * 1024                  # conservative default
    vmem_limit = min(int(0.75 * vmem_cap), 96 * 1024 * 1024)

    if tile_h is None:
        # Per-output-row bytes actually live during one grid step:
        #   input block (bf16, double-buffered) 4C | rows/left/right copies 6C
        #   ext (3C) + xs (9C) im2col bf16 24C | f32 acc 4*Cout
        #   output block (f32, double-buffered) 8*Cout
        row_bytes = W * (34 * C + 12 * Cout)
        tile_h = max(8, int(0.45 * vmem_limit) // max(row_bytes, 1))
    TH = int(max(1, min(H, tile_h, 512)))
    if TH >= 8:
        TH = (TH // 8) * 8
    if N == 1 and TH >= H and H >= 16:
        # Keep at least two row blocks so both v7x TensorCores get work.
        TH = min(TH, _round_up((H + 1) // 2, 8))

    Hp = _round_up(H, TH)
    if Hp != H:
        # Zero rows past H behave exactly like the conv's zero padding; the
        # extra output rows are sliced off below.
        x = jnp.pad(x, ((0, 0), (0, Hp - H), (0, 0), (0, 0)))
    nH = Hp // TH

    kernel = functools.partial(_dsconv_kernel, TH=TH, W=W, C=C, Cout=Cout)
    out = pl.pallas_call(
        kernel,
        out_shape=jax.ShapeDtypeStruct((N, Hp, W, Cout), jnp.float32),
        grid=(N, nH),
        in_specs=[
            # top halo row (clamped at the image top; zero-masked in-kernel)
            pl.BlockSpec((None, 1, W, C),
                         lambda n, i: (n, jnp.maximum(i * TH - 1, 0), 0, 0)),
            # main row block
            pl.BlockSpec((None, TH, W, C), lambda n, i: (n, i, 0, 0)),
            # bottom halo row (clamped at the image bottom; zero-masked)
            pl.BlockSpec((None, 1, W, C),
                         lambda n, i: (n, jnp.minimum((i + 1) * TH, Hp - 1), 0, 0)),
            # folded weights / bias stay resident (constant index maps)
            pl.BlockSpec((9 * C, Cout), lambda n, i: (0, 0)),
            pl.BlockSpec((1, Cout), lambda n, i: (0, 0)),
        ],
        out_specs=pl.BlockSpec((None, TH, W, Cout), lambda n, i: (n, i, 0, 0)),
        compiler_params=pltpu.CompilerParams(
            dimension_semantics=("parallel", "parallel"),
            vmem_limit_bytes=vmem_limit,
        ),
    )(x, x, x, wf, bf)
    return out[:, :H]


def depthwise_separable_conv(x_nchw, dw, db, pw, pb, *, tile_h=None):
    """PyTorch-layout entry point: NCHW in, NCHW out.
    (If the caller can use NHWC directly, call depthwise_separable_conv_nhwc
    to avoid two extra HBM round-trips for the transposes.)"""
    x = jnp.transpose(x_nchw, (0, 2, 3, 1))                    # NCHW -> NHWC
    y = depthwise_separable_conv_nhwc(x, dw, db, pw, pb, tile_h=tile_h)
    return jnp.transpose(y, (0, 3, 1, 2))                      # NHWC -> NCHW


# ----------------------------------------------------------------------------
# Pure-JAX reference (mirrors the PyTorch module) for validation
# ----------------------------------------------------------------------------
def _reference_nchw(x, dw, db, pw, pb):
    C = x.shape[1]
    Cout = pw.shape[1]
    wdw = jnp.transpose(dw, (1, 0)).reshape(C, 1, 3, 3)
    y = jax.lax.conv_general_dilated(
        x, wdw, window_strides=(1, 1), padding=((1, 1), (1, 1)),
        feature_group_count=C, dimension_numbers=('NCHW', 'OIHW', 'NCHW'))
    y = y + db.reshape(1, C, 1, 1)
    wpw = jnp.transpose(pw, (1, 0)).reshape(Cout, C, 1, 1)
    z = jax.lax.conv_general_dilated(
        y, wpw, window_strides=(1, 1), padding=((0, 0), (0, 0)),
        dimension_numbers=('NCHW', 'OIHW', 'NCHW'))
    return z + pb.reshape(1, Cout, 1, 1)


if __name__ == "__main__":
    key = jax.random.PRNGKey(0)
    kx, kdw, kdb, kpw, kpb = jax.random.split(key, 5)

    N, C, H, W = 2, 8, 16, 16
    Cout = 8
    x = jax.random.normal(kx, (N, C, H, W), jnp.float32)
    dw = jax.random.uniform(kdw, (9, C), jnp.float32, -0.2, 0.2)
    db = jax.random.uniform(kdb, (C,), jnp.float32, -0.2, 0.2)
    pw = jax.random.uniform(kpw, (C, Cout), jnp.float32, -0.2, 0.2)
    pb = jax.random.uniform(kpb, (Cout,), jnp.float32, -0.2, 0.2)

    # tile_h=4 -> 4 row blocks per image so the inter-block halo path is exercised.
    f = jax.jit(functools.partial(depthwise_separable_conv, tile_h=4))
    out = jax.block_until_ready(f(x, dw, db, pw, pb))
    assert out.shape == (N, Cout, H, W), out.shape
    assert bool(jnp.all(jnp.isfinite(out)))

    ref = _reference_nchw(x, dw, db, pw, pb)
    err = float(jnp.max(jnp.abs(out - ref)))
    assert err < 5e-2, f"max abs err {err}"     # bf16 MXU feed, f32 accumulation
    print("KERNEL_OK")
</pallas_src>

<mosaic_0001>
module attributes {stable_mosaic.version = 11 : i64} {
  func.func @_dsconv_kernel(%arg0: i32, %arg1: i32, %arg2: memref<1x1x16x8xbf16, #tpu.memory_space<vmem>>, %arg3: memref<1x4x16x8xbf16, #tpu.memory_space<vmem>>, %arg4: memref<1x1x16x8xbf16, #tpu.memory_space<vmem>>, %arg5: memref<72x8xbf16, #tpu.memory_space<vmem>>, %arg6: memref<1x8xf32, #tpu.memory_space<vmem>>, %arg7: memref<1x4x16x8xf32, #tpu.memory_space<vmem>>) attributes {dimension_semantics = [#tpu.dimension_semantics<parallel>, #tpu.dimension_semantics<parallel>], iteration_bounds = array<i64: 2, 4>, scalar_prefetch = 0 : i64, scratch_operands = 0 : i64, tpu.core_type = #tpu.core_type<tc>, window_params = [{transform_indices = @transform_0, window_bounds = array<i64: 1, 1, 16, 8>}, {transform_indices = @transform_1, window_bounds = array<i64: 1, 4, 16, 8>}, {transform_indices = @transform_2, window_bounds = array<i64: 1, 1, 16, 8>}, {pipeline_mode = #tpu.pipeline_mode<synchronous>, transform_indices = @transform_3, window_bounds = array<i64: 72, 8>}, {pipeline_mode = #tpu.pipeline_mode<synchronous>, transform_indices = @transform_4, window_bounds = array<i64: 1, 8>}, {transform_indices = @transform_5, window_bounds = array<i64: 1, 4, 16, 8>}]} {
    %cst = arith.constant 0.000000e+00 : bf16
    %0 = vector.broadcast %cst : bf16 to vector<1x16x8xbf16>
    %c0_i32 = arith.constant 0 : i32
    %1 = arith.cmpi sgt, %arg1, %c0_i32 : i32
    %c0 = arith.constant 0 : index
    %c0_0 = arith.constant 0 : index
    %c0_1 = arith.constant 0 : index
    %c0_2 = arith.constant 0 : index
    %2 = vector.load %arg2[%c0, %c0_0, %c0_1, %c0_2] : memref<1x1x16x8xbf16, #tpu.memory_space<vmem>>, vector<1x1x16x8xbf16>
    %3 = vector.shape_cast %2 : vector<1x1x16x8xbf16> to vector<1x16x8xbf16>
    %4 = arith.select %1, %3, %0 : vector<1x16x8xbf16>
    %c3_i32 = arith.constant 3 : i32
    %5 = arith.cmpi slt, %arg1, %c3_i32 : i32
    %c0_3 = arith.constant 0 : index
    %c0_4 = arith.constant 0 : index
    %c0_5 = arith.constant 0 : index
    %c0_6 = arith.constant 0 : index
    %6 = vector.load %arg4[%c0_3, %c0_4, %c0_5, %c0_6] : memref<1x1x16x8xbf16, #tpu.memory_space<vmem>>, vector<1x1x16x8xbf16>
    %7 = vector.shape_cast %6 : vector<1x1x16x8xbf16> to vector<1x16x8xbf16>
    %8 = arith.select %5, %7, %0 : vector<1x16x8xbf16>
    %c0_7 = arith.constant 0 : index
    %c0_8 = arith.constant 0 : index
    %c0_9 = arith.constant 0 : index
    %c0_10 = arith.constant 0 : index
    %9 = vector.load %arg3[%c0_7, %c0_8, %c0_9, %c0_10] : memref<1x4x16x8xbf16, #tpu.memory_space<vmem>>, vector<1x4x16x8xbf16>
    %10 = vector.shape_cast %9 : vector<1x4x16x8xbf16> to vector<4x16x8xbf16>
    %11 = tpu.concatenate %4, %10, %8 in 0 : vector<1x16x8xbf16>, vector<4x16x8xbf16>, vector<1x16x8xbf16> -> vector<6x16x8xbf16>
    %cst_11 = arith.constant 0.000000e+00 : bf16
    %12 = vector.broadcast %cst_11 : bf16 to vector<6x1x8xbf16>
    %13 = vector.extract_strided_slice %11 {offsets = [0, 0, 0], sizes = [6, 15, 8], strides = [1, 1, 1]} : vector<6x16x8xbf16> to vector<6x15x8xbf16>
    %14 = tpu.concatenate %12, %13 in 1 : vector<6x1x8xbf16>, vector<6x15x8xbf16> -> vector<6x16x8xbf16>
    %15 = vector.extract_strided_slice %11 {offsets = [0, 1, 0], sizes = [6, 15, 8], strides = [1, 1, 1]} : vector<6x16x8xbf16> to vector<6x15x8xbf16>
    %16 = tpu.concatenate %15, %12 in 1 : vector<6x15x8xbf16>, vector<6x1x8xbf16> -> vector<6x16x8xbf16>
    %17 = tpu.concatenate %14, %11, %16 in 2 : vector<6x16x8xbf16>, vector<6x16x8xbf16>, vector<6x16x8xbf16> -> vector<6x16x24xbf16>
    %18 = vector.extract_strided_slice %17 {offsets = [0, 0, 0], sizes = [4, 16, 24], strides = [1, 1, 1]} : vector<6x16x24xbf16> to vector<4x16x24xbf16>
    %19 = vector.extract_strided_slice %17 {offsets = [1, 0, 0], sizes = [4, 16, 24], strides = [1, 1, 1]} : vector<6x16x24xbf16> to vector<4x16x24xbf16>
    %20 = vector.extract_strided_slice %17 {offsets = [2, 0, 0], sizes = [4, 16, 24], strides = [1, 1, 1]} : vector<6x16x24xbf16> to vector<4x16x24xbf16>
    %21 = tpu.concatenate %18, %19, %20 in 2 : vector<4x16x24xbf16>, vector<4x16x24xbf16>, vector<4x16x24xbf16> -> vector<4x16x72xbf16>
    %22 = vector.shape_cast %21 : vector<4x16x72xbf16> to vector<64x72xbf16>
    %c0_12 = arith.constant 0 : index
    %c0_13 = arith.constant 0 : index
    %23 = vector.load %arg5[%c0_12, %c0_13] : memref<72x8xbf16, #tpu.memory_space<vmem>>, vector<72x8xbf16>
    %cst_14 = arith.constant dense<0.000000e+00> : vector<64x8xf32>
    %24 = tpu.matmul %22, %23, %cst_14 {dimension_numbers = #tpu.dot_dimension_numbers<[1], [0], [0], [1], [0, 0, 1, 1], [], []>} : vector<64x72xbf16>, vector<72x8xbf16>, vector<64x8xf32> -> vector<64x8xf32>
    %c0_15 = arith.constant 0 : index
    %c0_16 = arith.constant 0 : index
    %25 = vector.load %arg6[%c0_15, %c0_16] : memref<1x8xf32, #tpu.memory_space<vmem>>, vector<1x8xf32>
    %26 = vector.broadcast %25 : vector<1x8xf32> to vector<64x8xf32>
    %27 = arith.addf %24, %26 : vector<64x8xf32>
    %28 = vector.shape_cast %27 : vector<64x8xf32> to vector<4x16x8xf32>
    %c0_17 = arith.constant 0 : index
    %c0_18 = arith.constant 0 : index
    %c0_19 = arith.constant 0 : index
    %c0_20 = arith.constant 0 : index
    %29 = vector.load %arg7[%c0_17, %c0_18, %c0_19, %c0_20] : memref<1x4x16x8xf32, #tpu.memory_space<vmem>>, vector<1x4x16x8xf32>
    %30 = vector.shape_cast %29 : vector<1x4x16x8xf32> to vector<4x16x8xf32>
    %31 = vector.shape_cast %28 : vector<4x16x8xf32> to vector<1x4x16x8xf32>
    tpu.vector_store %arg7[%c0_17, %c0_18, %c0_19, %c0_20], %31 {strides = array<i32>} : memref<1x4x16x8xf32, #tpu.memory_space<vmem>>, vector<1x4x16x8xf32>,
    return
  }
  func.func @transform_0(%arg0: i32, %arg1: i32) -> (i32, i32, i32, i32) {
    %c4_i32 = arith.constant 4 : i32
    %0 = arith.muli %arg1, %c4_i32 : i32
    %c1_i32 = arith.constant 1 : i32
    %1 = arith.subi %0, %c1_i32 : i32
    %c0_i32 = arith.constant 0 : i32
    %2 = arith.maxsi %1, %c0_i32 : i32
    %c0_i32_0 = arith.constant 0 : i32
    %c0_i32_1 = arith.constant 0 : i32
    %c0_i32_2 = arith.constant 0 : i32
    return %arg0, %2, %c0_i32_0, %c0_i32_1 : i32, i32, i32, i32
  }
  func.func @transform_1(%arg0: i32, %arg1: i32) -> (i32, i32, i32, i32) {
    %c0_i32 = arith.constant 0 : i32
    %c0_i32_0 = arith.constant 0 : i32
    %c0_i32_1 = arith.constant 0 : i32
    return %arg0, %arg1, %c0_i32, %c0_i32_0 : i32, i32, i32, i32
  }
  func.func @transform_2(%arg0: i32, %arg1: i32) -> (i32, i32, i32, i32) {
    %c1_i32 = arith.constant 1 : i32
    %0 = arith.addi %arg1, %c1_i32 : i32
    %c4_i32 = arith.constant 4 : i32
    %1 = arith.muli %0, %c4_i32 : i32
    %c15_i32 = arith.constant 15 : i32
    %2 = arith.minsi %1, %c15_i32 : i32
    %c0_i32 = arith.constant 0 : i32
    %c0_i32_0 = arith.constant 0 : i32
    %c0_i32_1 = arith.constant 0 : i32
    return %arg0, %2, %c0_i32, %c0_i32_0 : i32, i32, i32, i32
  }
  func.func @transform_3(%arg0: i32, %arg1: i32) -> (i32, i32) {
    %c0_i32 = arith.constant 0 : i32
    %c0_i32_0 = arith.constant 0 : i32
    %c0_i32_1 = arith.constant 0 : i32
    return %c0_i32, %c0_i32_0 : i32, i32
  }
  func.func @transform_4(%arg0: i32, %arg1: i32) -> (i32, i32) {
    %c0_i32 = arith.constant 0 : i32
    %c0_i32_0 = arith.constant 0 : i32
    %c0_i32_1 = arith.constant 0 : i32
    return %c0_i32, %c0_i32_0 : i32, i32
  }
  func.func @transform_5(%arg0: i32, %arg1: i32) -> (i32, i32, i32, i32) {
    %c0_i32 = arith.constant 0 : i32
    %c0_i32_0 = arith.constant 0 : i32
    %c0_i32_1 = arith.constant 0 : i32
    return %arg0, %arg1, %c0_i32, %c0_i32_0 : i32, i32, i32, i32
  }
}

</mosaic_0001>

<llo_original>
// kernel: depthwise_separable_conv.1
$region0: #{depthwise_separable_conv.1}
  #allocation0 [shape = 'u32[]', space=smem, size = 0x4, offset = 0x4, fixed_abs, tag = 'smem constant byte address 0x4 - core index']
  #allocation1 [shape = 'u32[144,128]{1,0:T(1,128)}', space=vmem, size = 0x12000, scoped, tag = 'internal scratch']
  %s0 = inlined_call_operand.vmem [shape: bf16[2,16,16,8], index: 0, kind: input, shape index: {}, may-alias: {0,1,2}]
  %s1 = inlined_call_operand.vmem [shape: bf16[2,16,16,8], index: 1, kind: input, shape index: {}, may-alias: {0,1,2}]
  %s2 = inlined_call_operand.vmem [shape: bf16[2,16,16,8], index: 2, kind: input, shape index: {}, may-alias: {0,1,2}]
  %s3 = inlined_call_operand.vmem [shape: bf16[72,8], index: 3, kind: input, shape index: {}]
  %s4 = inlined_call_operand.vmem [shape: f32[1,8], index: 4, kind: input, shape index: {}]
  %s5 = inlined_call_operand.vmem [shape: f32[2,16,16,8], index: 5, kind: output, shape index: {}]
  %s6 = sld [smem:[#allocation0]]
  $region53: #{depthwise_separable_conv.1} parent=0
    _
  %s8 = ssub.s32 1, %s6
  %s9 = scalar_select 0, %s8, %s6
  loop: start=0, step=1, limit=10
  $region2: #{depthwise_separable_conv.1} parent=0 // loop_pre_header
    _
  $region3: #{depthwise_separable_conv.1} parent=0 // loop_header
    %s11 = sphi 0, %s15
    %p12 = scmp.ge.s32.totalorder %s11, 10
    %s18 = sphi 0, %s30
    %s19 = sphi 0, %s26
    %s20 = sphi 0, %s18
    %s21 = sphi 0, %s19
    %s22 = sphi 0, %s20
    %s23 = sphi 0, %s21
    %s43 = sphi 0, %s45
    %s46 = sphi 0, %s43
    %s47 = sphi 0, %s46
    %s63 = sphi 0, %s47
    %s71 = sphi 0, %s73
    %s74 = sphi 0, %s71
    %s75 = sphi 0, %s74
    %s91 = sphi 0, %s75
    %s107 = sphi 0, %s109
    %s110 = sphi 0, %s107
    %s111 = sphi 0, %s110
    %s127 = sphi 0, %s111
    %s131 = sphi 0, %s131
    %s133 = sphi 0, %s131
    %s134 = sphi 0, %s133
    %s148 = sphi 0, %s134
    %s152 = sphi 0, %s152
    %s154 = sphi 0, %s152
    %s155 = sphi 0, %s154
    %s169 = sphi 0, %s155
    %s177 = sphi 0, %s179
    %s180 = sphi 0, %s177
    %s181 = sphi 0, %s180
    %s197 = sphi 0, %s181
  $region4: #{depthwise_separable_conv.1} parent=0 // loop_header_branch
    %14 = sbr.rel (%p12) target = $region8
  $region5: #{depthwise_separable_conv.1} parent=0 // loop_body
    %s16 = ssub.s32 %s11, 1
    %s17 = ssub.s32 %s11, 2
    %s24 = sadd.s32 1, %s19
    %p25 = scmp.ge.s32.totalorder %s24, 4
    %s26 = scalar_select %p25, 0, %s24
    %s27 = sadd.s32 1, %s18
    %s28 = scalar_select %p25, %s27, %s18
    %p29 = scmp.ge.s32.totalorder %s28, 2
    %s30 = scalar_select %p29, 0, %s28
    %s31 = smul.u32 %s19, 4
    %s32 = ssub.s32 %s31, 1
    %p33 = scmp.gt.s32.totalorder %s32, 0
    %s34 = scalar_select %p33, %s32, 0
    %s35 = smul.u32 %s26, 4
    %s36 = ssub.s32 %s35, 1
    %p37 = scmp.gt.s32.totalorder %s36, 0
    %s38 = scalar_select %p37, %s36, 0
    %s39 = ssub.s32 %s18, %s30
    %s40 = ssub.s32 %s34, %s38
    %s41 = sor.u32 %s39, %s40
    %p42 = scmp.eq.s32.totalorder %s41, 0
    %s44 = sadd.s32 %s43, 1
    %s45 = scalar_select %p42, %s43, %s44
    %p48 = pneg %p42
    %p49 = scmp.eq.s32.totalorder %s11, 7
    %p50 = por %p48, %p49
    %p51 = scmp.ne.s32.totalorder %s43, %s46
    %p52 = scmp.eq.s32.totalorder %s11, 0
    %p53 = por %p51, %p52
    %p54 = scmp.ne.s32.totalorder %s43, %s46
    %p55 = scmp.eq.s32.totalorder %s16, 7
    %p56 = por %p54, %p55
    %p57 = scmp.ne.s32.totalorder %s46, %s47
    %p58 = scmp.eq.s32.totalorder %s16, 0
    %p59 = por %p57, %p58
    %p60 = scmp.ne.s32.totalorder %s46, %s47
    %p61 = scmp.eq.s32.totalorder %s17, 7
    %p62 = por %p60, %p61
    %p64 = scmp.ne.s32.totalorder %s47, %s63
    %p65 = scmp.eq.s32.totalorder %s17, 0
    %p66 = por %p64, %p65
    %s67 = ssub.s32 %s18, %s30
    %s68 = ssub.s32 %s19, %s26
    %s69 = sor.u32 %s67, %s68
    %p70 = scmp.eq.s32.totalorder %s69, 0
    %s72 = sadd.s32 %s71, 1
    %s73 = scalar_select %p70, %s71, %s72
    %p76 = pneg %p70
    %p77 = scmp.eq.s32.totalorder %s11, 7
    %p78 = por %p76, %p77
    %p79 = scmp.ne.s32.totalorder %s71, %s74
    %p80 = scmp.eq.s32.totalorder %s11, 0
    %p81 = por %p79, %p80
    %p82 = scmp.ne.s32.totalorder %s71, %s74
    %p83 = scmp.eq.s32.totalorder %s16, 7
    %p84 = por %p82, %p83
    %p85 = scmp.ne.s32.totalorder %s74, %s75
    %p86 = scmp.eq.s32.totalorder %s16, 0
    %p87 = por %p85, %p86
    %p88 = scmp.ne.s32.totalorder %s74, %s75
    %p89 = scmp.eq.s32.totalorder %s17, 7
    %p90 = por %p88, %p89
    %p92 = scmp.ne.s32.totalorder %s75, %s91
    %p93 = scmp.eq.s32.totalorder %s17, 0
    %p94 = por %p92, %p93
    %s95 = sadd.s32 %s19, 1
    %s96 = smul.u32 %s95, 4
    %p97 = scmp.lt.s32.totalorder %s96, 15
    %s98 = scalar_select %p97, %s96, 15
    %s99 = sadd.s32 %s26, 1
    %s100 = smul.u32 %s99, 4
    %p101 = scmp.lt.s32.totalorder %s100, 15
    %s102 = scalar_select %p101, %s100, 15
    %s103 = ssub.s32 %s18, %s30
    %s104 = ssub.s32 %s98, %s102
    %s105 = sor.u32 %s103, %s104
    %p106 = scmp.eq.s32.totalorder %s105, 0
    %s108 = sadd.s32 %s107, 1
    %s109 = scalar_select %p106, %s107, %s108
    %p112 = pneg %p106
    %p113 = scmp.eq.s32.totalorder %s11, 7
    %p114 = por %p112, %p113
    %p115 = scmp.ne.s32.totalorder %s107, %s110
    %p116 = scmp.eq.s32.totalorder %s11, 0
    %p117 = por %p115, %p116
    %p118 = scmp.ne.s32.totalorder %s107, %s110
    %p119 = scmp.eq.s32.totalorder %s16, 7
    %p120 = por %p118, %p119
    %p121 = scmp.ne.s32.totalorder %s110, %s111
    %p122 = scmp.eq.s32.totalorder %s16, 0
    %p123 = por %p121, %p122
    %p124 = scmp.ne.s32.totalorder %s110, %s111
    %p125 = scmp.eq.s32.totalorder %s17, 7
    %p126 = por %p124, %p125
    %p128 = scmp.ne.s32.totalorder %s111, %s127
    %p129 = scmp.eq.s32.totalorder %s17, 0
    %p130 = por %p128, %p129
    %s132 = sadd.s32 %s131, 1
    %p135 = scmp.eq.s32.totalorder %s11, 7
    %p136 = scmp.ne.s32.totalorder %s131, %s133
    %p137 = scmp.eq.s32.totalorder %s11, 0
    %p138 = por %p136, %p137
    %p139 = scmp.ne.s32.totalorder %s131, %s133
    %p140 = scmp.eq.s32.totalorder %s16, 7
    %p141 = por %p139, %p140
    %p142 = scmp.ne.s32.totalorder %s133, %s134
    %p143 = scmp.eq.s32.totalorder %s16, 0
    %p144 = por %p142, %p143
    %p145 = scmp.ne.s32.totalorder %s133, %s134
    %p146 = scmp.eq.s32.totalorder %s17, 7
    %p147 = por %p145, %p146
    %p149 = scmp.ne.s32.totalorder %s134, %s148
    %p150 = scmp.eq.s32.totalorder %s17, 0
    %p151 = por %p149, %p150
    %s153 = sadd.s32 %s152, 1
    %p156 = scmp.eq.s32.totalorder %s11, 7
    %p157 = scmp.ne.s32.totalorder %s152, %s154
    %p158 = scmp.eq.s32.totalorder %s11, 0
    %p159 = por %p157, %p158
    %p160 = scmp.ne.s32.totalorder %s152, %s154
    %p161 = scmp.eq.s32.totalorder %s16, 7
    %p162 = por %p160, %p161
    %p163 = scmp.ne.s32.totalorder %s154, %s155
    %p164 = scmp.eq.s32.totalorder %s16, 0
    %p165 = por %p163, %p164
    %p166 = scmp.ne.s32.totalorder %s154, %s155
    %p167 = scmp.eq.s32.totalorder %s17, 7
    %p168 = por %p166, %p167
    %p170 = scmp.ne.s32.totalorder %s155, %s169
    %p171 = scmp.eq.s32.totalorder %s17, 0
    %p172 = por %p170, %p171
    %s173 = ssub.s32 %s18, %s30
    %s174 = ssub.s32 %s19, %s26
    %s175 = sor.u32 %s173, %s174
    %p176 = scmp.eq.s32.totalorder %s175, 0
    %s178 = sadd.s32 %s177, 1
    %s179 = scalar_select %p176, %s177, %s178
    %p182 = pneg %p176
    %p183 = scmp.eq.s32.totalorder %s11, 7
    %p184 = por %p182, %p183
    %p185 = scmp.ne.s32.totalorder %s177, %s180
    %p186 = scmp.eq.s32.totalorder %s11, 0
    %p187 = por %p185, %p186
    %p188 = scmp.ne.s32.totalorder %s177, %s180
    %p189 = scmp.eq.s32.totalorder %s16, 7
    %p190 = por %p188, %p189
    %p191 = scmp.ne.s32.totalorder %s180, %s181
    %p192 = scmp.eq.s32.totalorder %s16, 0
    %p193 = por %p191, %p192
    %p194 = scmp.ne.s32.totalorder %s180, %s181
    %p195 = scmp.eq.s32.totalorder %s17, 7
    %p196 = por %p194, %p195
    %p198 = scmp.ne.s32.totalorder %s181, %s197
    %p199 = scmp.eq.s32.totalorder %s17, 0
    %p200 = por %p198, %p199
    %p201 = scmp.le.s32.totalorder 1, %s11
    %p202 = scmp.lt.s32.totalorder %s11, 9
    %p203 = pnand %p201, %p202
    %p204 = pneg %p203
    // Predicated region
    $region9: #{depthwise_separable_conv.1} parent=5 // pred_check
      _
    $region10: #{depthwise_separable_conv.1} parent=5 // pred_check_branch
      %206 = sbr.rel (%p203) target = $region12
    $region11: #{depthwise_separable_conv.1} parent=5 // pred_region
      %s207 = ssub.s32 %s11, 1
      // Predicated region
      $region13: #{depthwise_separable_conv.1} parent=11 // pred_check
        %p208 = pneg %p144
      $region14: #{depthwise_separable_conv.1} parent=11 // pred_check_branch
        %210 = sbr.rel (%p208) target = $region16
      $region15: #{depthwise_separable_conv.1} parent=11 // pred_region
        _
      $region16: #{depthwise_separable_conv.1} parent=11 // pred_fallthru
        _
      // Predicated region
      $region17: #{depthwise_separable_conv.1} parent=11 // pred_check
        %p211 = pneg %p165
      $region18: #{depthwise_separable_conv.1} parent=11 // pred_check_branch
        %213 = sbr.rel (%p211) target = $region20
      $region19: #{depthwise_separable_conv.1} parent=11 // pred_region
        _
      $region20: #{depthwise_separable_conv.1} parent=11 // pred_fallthru
        _
    $region12: #{depthwise_separable_conv.1} parent=5 // pred_fallthru
      _
    %p214 = scmp.lt.s32.totalorder %s11, 8
    // Predicated region
    $region21: #{depthwise_separable_conv.1} parent=5 // pred_check
      %p215 = pneg %p214
    $region22: #{depthwise_separable_conv.1} parent=5 // pred_check_branch
      %217 = sbr.rel (%p215) target = $region24
    $region23: #{depthwise_separable_conv.1} parent=5 // pred_region
      // Predicated region
      $region25: #{depthwise_separable_conv.1} parent=23 // pred_check
        %p218 = pneg %p53
      $region26: #{depthwise_separable_conv.1} parent=23 // pred_check_branch
        %220 = sbr.rel (%p218) target = $region28
      $region27: #{depthwise_separable_conv.1} parent=23 // pred_region
        %s221 = smul.u32 %s19, 4
        %s222 = ssub.s32 %s221, 1
        %p223 = scmp.gt.s32.totalorder %s222, 0
        %s224 = scalar_select %p223, %s222, 0
        %p225 = scmp.lt.s32.totalorder %s18, 1
        %s226 = scalar_select %p225, %s18, 1
        %p227 = scmp.lt.s32.totalorder %s224, 15
        %s228 = scalar_select %p227, %s224, 15
        %s229 = smul.addr %s228, 2
        %s230 = smul.addr %s226, 32
        %s231 = sadd.s32 %s229, %s230
        %s232 = smul.addr %s231, 4
        %s233 = scalar_lea.vmem %s0, %s232
        %s234 = smul.u32 %s19, 4
        %s235 = ssub.s32 %s234, 1
        %p236 = scmp.gt.s32.totalorder %s235, 0
        %s237 = scalar_select %p236, %s235, 0
      $region28: #{depthwise_separable_conv.1} parent=23 // pred_fallthru
        _
      // Predicated region
      $region29: #{depthwise_separable_conv.1} parent=23 // pred_check
        %p238 = pneg %p81
      $region30: #{depthwise_separable_conv.1} parent=23 // pred_check_branch
        %240 = sbr.rel (%p238) target = $region32
      $region31: #{depthwise_separable_conv.1} parent=23 // pred_region
        %s241 = smul.u32 4, %s19
        %p242 = scmp.lt.s32.totalorder %s18, 1
        %s243 = scalar_select %p242, %s18, 1
        %p244 = scmp.lt.s32.totalorder %s241, 15
        %s245 = scalar_select %p244, %s241, 15
        %s246 = smul.addr %s245, 2
        %s247 = smul.addr %s243, 32
        %s248 = sadd.s32 %s246, %s247
        %s249 = smul.addr %s248, 4
        %s250 = scalar_lea.vmem %s1, %s249
        %s251 = smul.u32 4, %s19
      $region32: #{depthwise_separable_conv.1} parent=23 // pred_fallthru
        _
      // Predicated region
      $region33: #{depthwise_separable_conv.1} parent=23 // pred_check
        %p252 = pneg %p117
      $region34: #{depthwise_separable_conv.1} parent=23 // pred_check_branch
        %254 = sbr.rel (%p252) target = $region36
      $region35: #{depthwise_separable_conv.1} parent=23 // pred_region
        %s255 = sadd.s32 %s19, 1
        %s256 = smul.u32 %s255, 4
        %p257 = scmp.lt.s32.totalorder %s256, 15
        %s258 = scalar_select %p257, %s256, 15
        %p259 = scmp.lt.s32.totalorder %s18, 1
        %s260 = scalar_select %p259, %s18, 1
        %p261 = scmp.lt.s32.totalorder %s258, 15
        %s262 = scalar_select %p261, %s258, 15
        %s263 = smul.addr %s262, 2
        %s264 = smul.addr %s260, 32
        %s265 = sadd.s32 %s263, %s264
        %s266 = smul.addr %s265, 4
        %s267 = scalar_lea.vmem %s2, %s266
        %s268 = sadd.s32 %s19, 1
        %s269 = smul.u32 %s268, 4
        %p270 = scmp.lt.s32.totalorder %s269, 15
        %s271 = scalar_select %p270, %s269, 15
      $region36: #{depthwise_separable_conv.1} parent=23 // pred_fallthru
        _
    $region24: #{depthwise_separable_conv.1} parent=5 // pred_fallthru
      _
    %p272 = scmp.le.s32.totalorder 1, %s11
    %p273 = scmp.lt.s32.totalorder %s11, 9
    %p274 = pnand %p272, %p273
    %p275 = pneg %p274
    // Predicated region
    $region37: #{depthwise_separable_conv.1} parent=5 // pred_check
      _
    $region38: #{depthwise_separable_conv.1} parent=5 // pred_check_branch
      %277 = sbr.rel (%p274) target = $region40
    $region39: #{depthwise_separable_conv.1} parent=5 // pred_region
      %s278 = ssub.s32 %s11, 1
      %s279 = smul.u32 %s21, 4
      %s280 = ssub.s32 %s279, 1
      %p281 = scmp.gt.s32.totalorder %s280, 0
      %s282 = scalar_select %p281, %s280, 0
      %p283 = scmp.lt.s32.totalorder %s20, 1
      %s284 = scalar_select %p283, %s20, 1
      %p285 = scmp.lt.s32.totalorder %s282, 15
      %s286 = scalar_select %p285, %s282, 15
      %s287 = smul.addr %s286, 2
      %s288 = smul.addr %s284, 32
      %s289 = sadd.s32 %s287, %s288
      %s290 = smul.addr %s289, 4
      %s291 = scalar_lea.vmem %s0, %s290
      %p292 = pneg %p59
      %p293 = pneg %p56
      %s294 = smul.u32 4, %s21
      %p295 = scmp.lt.s32.totalorder %s20, 1
      %s296 = scalar_select %p295, %s20, 1
      %p297 = scmp.lt.s32.totalorder %s294, 15
      %s298 = scalar_select %p297, %s294, 15
      %s299 = smul.addr %s298, 2
      %s300 = smul.addr %s296, 32
      %s301 = sadd.s32 %s299, %s300
      %s302 = smul.addr %s301, 4
      %s303 = scalar_lea.vmem %s1, %s302
      %p304 = pneg %p87
      %p305 = pneg %p84
      %s306 = sadd.s32 %s21, 1
      %s307 = smul.u32 %s306, 4
      %p308 = scmp.lt.s32.totalorder %s307, 15
      %s309 = scalar_select %p308, %s307, 15
      %p310 = scmp.lt.s32.totalorder %s20, 1
      %s311 = scalar_select %p310, %s20, 1
      %p312 = scmp.lt.s32.totalorder %s309, 15
      %s313 = scalar_select %p312, %s309, 15
      %s314 = smul.addr %s313, 2
      %s315 = smul.addr %s311, 32
      %s316 = sadd.s32 %s314, %s315
      %s317 = smul.addr %s316, 4
      %s318 = scalar_lea.vmem %s2, %s317
      %p319 = pneg %p123
      %p320 = pneg %p120
      %p321 = pneg %p144
      %p322 = pneg %p141
      %p323 = pneg %p165
      %p324 = pneg %p162
      %p325 = pneg %p193
      %p326 = pneg %p190
      %s327 = smul.u32 4, %s21
      %p328 = scmp.lt.s32.totalorder %s20, 1
      %s329 = scalar_select %p328, %s20, 1
      %p330 = scmp.lt.s32.totalorder %s327, 15
      %s331 = scalar_select %p330, %s327, 15
      %s332 = smul.addr %s331, 2
      %s333 = smul.addr %s329, 32
      %s334 = sadd.s32 %s332, %s333
      %s335 = smul.addr %s334, 8
      %s336 = scalar_lea.vmem %s5, %s335
      %s337 = smul.u32 %s21, 4
      %s338 = ssub.s32 %s337, 1
      %p339 = scmp.gt.s32.totalorder %s338, 0
      %s340 = scalar_select %p339, %s338, 0
      %p341 = scmp.lt.s32.totalorder %s20, 1
      %s342 = scalar_select %p341, %s20, 1
      %p343 = scmp.lt.s32.totalorder %s340, 15
      %s344 = scalar_select %p343, %s340, 15
      %s345 = smul.addr %s344, 2
      %s346 = smul.addr %s342, 32
      %s347 = sadd.s32 %s345, %s346
      %s348 = smul.addr %s347, 4
      %s349 = scalar_lea.vmem %s0, %s348
      %s350 = smul.u32 %s21, 4
      %s351 = ssub.s32 %s350, 1
      %p352 = scmp.gt.s32.totalorder %s351, 0
      %s353 = scalar_select %p352, %s351, 0
      %s354 = smul.u32 4, %s21
      %p355 = scmp.lt.s32.totalorder %s20, 1
      %s356 = scalar_select %p355, %s20, 1
      %p357 = scmp.lt.s32.totalorder %s354, 15
      %s358 = scalar_select %p357, %s354, 15
      %s359 = smul.addr %s358, 2
      %s360 = smul.addr %s356, 32
      %s361 = sadd.s32 %s359, %s360
      %s362 = smul.addr %s361, 4
      %s363 = scalar_lea.vmem %s1, %s362
      %s364 = smul.u32 4, %s21
      %s365 = sadd.s32 %s21, 1
      %s366 = smul.u32 %s365, 4
      %p367 = scmp.lt.s32.totalorder %s366, 15
      %s368 = scalar_select %p367, %s366, 15
      %p369 = scmp.lt.s32.totalorder %s20, 1
      %s370 = scalar_select %p369, %s20, 1
      %p371 = scmp.lt.s32.totalorder %s368, 15
      %s372 = scalar_select %p371, %s368, 15
      %s373 = smul.addr %s372, 2
      %s374 = smul.addr %s370, 32
      %s375 = sadd.s32 %s373, %s374
      %s376 = smul.addr %s375, 4
      %s377 = scalar_lea.vmem %s2, %s376
      %s378 = sadd.s32 %s21, 1
      %s379 = smul.u32 %s378, 4
      %p380 = scmp.lt.s32.totalorder %s379, 15
      %s381 = scalar_select %p380, %s379, 15
      %s382 = smul.u32 4, %s21
      %p383 = scmp.lt.s32.totalorder %s20, 1
      %s384 = scalar_select %p383, %s20, 1
      %p385 = scmp.lt.s32.totalorder %s382, 15
      %s386 = scalar_select %p385, %s382, 15
      %s387 = smul.addr %s386, 2
      %s388 = smul.addr %s384, 32
      %s389 = sadd.s32 %s387, %s388
      %s390 = smul.addr %s389, 8
      %s391 = scalar_lea.vmem %s5, %s390
      %s392 = smul.u32 4, %s21
      %p394 = scmp.gt.s32.totalorder %s21, 0
      %v395 = vld [vmem:[%s349] sm:$0xf]
      %v396 = vld [vmem:[%s349 + $0x4] sm:$0xf]
      %s397 = scalar_select %p394, 1, 0
      %v398 = vstv %s397
      %vm399 = vcmp.eq.s32.totalorder %v398, 1
      %v400 = vsel %vm399, %v395, 0
      %v401 = vsel %vm399, %v396, 0
      %p402 = scmp.lt.s32.totalorder %s21, 3
      %v403 = vld [vmem:[%s377] sm:$0xf]
      %v404 = vld [vmem:[%s377 + $0x4] sm:$0xf]
      %s405 = scalar_select %p402, 1, 0
      %v406 = vstv %s405
      %vm407 = vcmp.eq.s32.totalorder %v406, 1
      %v408 = vsel %vm407, %v403, 0
      %v409 = vsel %vm407, %v404, 0
      %v410 = vld [vmem:[%s363] sm:$0xf]
      %v411 = vld [vmem:[%s363 + $0x4] sm:$0xf]
      %v412 = vld [vmem:[%s363 + $0x8] sm:$0xf]
      %v413 = vld [vmem:[%s363 + $0xc] sm:$0xf]
      %v414 = vld [vmem:[%s363 + $0x10] sm:$0xf]
      %v415 = vld [vmem:[%s363 + $0x14] sm:$0xf]
      %v416 = vld [vmem:[%s363 + $0x18] sm:$0xf]
      %v417 = vld [vmem:[%s363 + $0x1c] sm:$0xf]
      %v430 = vunpack.c.l.b16 %v400
      %v431 = vunpack.c.l.b16 %v401
      %v432 = vunpack.c.l.b16 %v410
      %v433 = vunpack.c.l.b16 %v411
      %v434 = vunpack.c.l.b16 %v412
      %v435 = vunpack.c.l.b16 %v413
      %v436 = vunpack.c.l.b16 %v414
      %v437 = vunpack.c.l.b16 %v415
      %v438 = vunpack.c.l.b16 %v416
      %v439 = vunpack.c.l.b16 %v417
      %v440 = vunpack.c.l.b16 %v408
      %v441 = vunpack.c.l.b16 %v409
      %v442 = vpack.c.b16 %v431, %v430
      %v443 = vpack.c.b16 %v433, %v432
      %v444 = vpack.c.b16 %v435, %v434
      %v445 = vpack.c.b16 %v437, %v436
      %v446 = vpack.c.b16 %v439, %v438
      %v447 = vpack.c.b16 %v441, %v440
      %v449 = vshrl.u32 %v442, 16
      %v451 = vrot.slane %v449, 7
      %v452 = vshll.u32 %v442, 16
      %v454 = vor.u32 %v451, %v452
      %v456 = vshrl.u32 %v443, 16
      %v458 = vrot.slane %v456, 7
      %v459 = vshll.u32 %v443, 16
      %v461 = vor.u32 %v458, %v459
      %v463 = vshrl.u32 %v444, 16
      %v465 = vrot.slane %v463, 7
      %v466 = vshll.u32 %v444, 16
      %v468 = vor.u32 %v465, %v466
      %v470 = vshrl.u32 %v445, 16
      %v472 = vrot.slane %v470, 7
      %v473 = vshll.u32 %v445, 16
      %v475 = vor.u32 %v472, %v473
      %v477 = vshrl.u32 %v446, 16
      %v479 = vrot.slane %v477, 7
      %v480 = vshll.u32 %v446, 16
      %v482 = vor.u32 %v479, %v480
      %v484 = vshrl.u32 %v447, 16
      %v486 = vrot.slane %v484, 7
      %v487 = vshll.u32 %v447, 16
      %v489 = vor.u32 %v486, %v487
      %vm496 = vcmask 1040384
      %vm497 = vsmask.f32 256
      %vm498 = vmand %vm496, %vm497
      %v499 = vsel %vm498, 0, %v454
      %v500 = vsel %vm498, 0, %v461
      %v501 = vsel %vm498, 0, %v468
      %v502 = vsel %vm498, 0, %v475
      %v503 = vsel %vm498, 0, %v482
      %v504 = vsel %vm498, 0, %v489
      %v505 = vrot.slane %v452, 1
      %v506 = vor.u32 %v449, %v505
      %v507 = vrot.slane %v459, 1
      %v508 = vor.u32 %v456, %v507
      %v509 = vrot.slane %v466, 1
      %v510 = vor.u32 %v463, %v509
      %v511 = vrot.slane %v473, 1
      %v512 = vor.u32 %v470, %v511
      %v513 = vrot.slane %v480, 1
      %v514 = vor.u32 %v477, %v513
      %v515 = vrot.slane %v487, 1
      %v516 = vor.u32 %v484, %v515
      %vm523 = vcmask 1047552
      %vm524 = vsmask.f32 7424
      %vm525 = vmand %vm523, %vm524
      %v526 = vsel %vm525, %v506, 0
      %v527 = vsel %vm525, %v508, 0
      %v528 = vsel %vm525, %v510, 0
      %v529 = vsel %vm525, %v512, 0
      %v530 = vsel %vm525, %v514, 0
      %v531 = vsel %vm525, %v516, 0
      %532 = vrot.lane.b32.xlu0 %v442, 8
      %v533 = vpop.permute.xlu0 %532
      %534 = vrot.lane.b32.xlu0 %v443, 8
      %v535 = vpop.permute.xlu0 %534
      %536 = vrot.lane.b32.xlu0 %v444, 8
      %v537 = vpop.permute.xlu0 %536
      %538 = vrot.lane.b32.xlu0 %v445, 8
      %v539 = vpop.permute.xlu0 %538
      %540 = vrot.lane.b32.xlu0 %v446, 8
      %v541 = vpop.permute.xlu0 %540
      %542 = vrot.lane.b32.xlu0 %v447, 8
      %v543 = vpop.permute.xlu0 %542
      %550 = vrot.lane.b32.xlu0 %v526, 16
      %v551 = vpop.permute.xlu0 %550
      %552 = vrot.lane.b32.xlu0 %v527, 16
      %v553 = vpop.permute.xlu0 %552
      %554 = vrot.lane.b32.xlu0 %v528, 16
      %v555 = vpop.permute.xlu0 %554
      %556 = vrot.lane.b32.xlu0 %v529, 16
      %v557 = vpop.permute.xlu0 %556
      %558 = vrot.lane.b32.xlu0 %v530, 16
      %v559 = vpop.permute.xlu0 %558
      %560 = vrot.lane.b32.xlu0 %v531, 16
      %v561 = vpop.permute.xlu0 %560
      %vm562 = vcmask 64512
      %v565 = vsel %vm562, %v499, %v533
      %v568 = vsel %vm562, %v500, %v535
      %v571 = vsel %vm562, %v501, %v537
      %v574 = vsel %vm562, %v502, %v539
      %v577 = vsel %vm562, %v503, %v541
      %v580 = vsel %vm562, %v504, %v543
      %vm581 = vcmask 130048
      %v583 = vsel %vm581, %v565, %v551
      %v585 = vsel %vm581, %v568, %v553
      %v587 = vsel %vm581, %v571, %v555
      %v589 = vsel %vm581, %v574, %v557
      %v591 = vsel %vm581, %v577, %v559
      %v593 = vsel %vm581, %v580, %v561
      %598 = vrot.lane.b32.xlu0 %v585, 24
      %v599 = vpop.permute.xlu0 %598
      %600 = vrot.lane.b32.xlu0 %v587, 24
      %v601 = vpop.permute.xlu0 %600
      %602 = vrot.lane.b32.xlu0 %v589, 24
      %v603 = vpop.permute.xlu0 %602
      %604 = vrot.lane.b32.xlu0 %v591, 24
      %v605 = vpop.permute.xlu0 %604
      %607 = vrot.lane.b32.xlu0 %v587, 48
      %v608 = vpop.permute.xlu0 %607
      %609 = vrot.lane.b32.xlu0 %v589, 48
      %v610 = vpop.permute.xlu0 %609
      %611 = vrot.lane.b32.xlu0 %v591, 48
      %v612 = vpop.permute.xlu0 %611
      %613 = vrot.lane.b32.xlu0 %v593, 48
      %v614 = vpop.permute.xlu0 %613
      %vm615 = vcmask 195584
      %v617 = vsel %vm615, %v583, %v599
      %v619 = vsel %vm615, %v585, %v601
      %v621 = vsel %vm615, %v587, %v603
      %v623 = vsel %vm615, %v589, %v605
      %vm624 = vcmask 392192
      %v626 = vsel %vm624, %v617, %v608
      %v628 = vsel %vm624, %v619, %v610
      %v630 = vsel %vm624, %v621, %v612
      %v632 = vsel %vm624, %v623, %v614
      %v633 = vld [vmem:[%s3] sm:$0xf]
      %v634 = vld [vmem:[%s3 + $0x4] sm:$0xf]
      %v635 = vld [vmem:[%s3 + $0x8] sm:$0xf]
      %v636 = vld [vmem:[%s3 + $0xc] sm:$0xf]
      %v637 = vld [vmem:[%s3 + $0x10] sm:$0xf]
      %v638 = vld [vmem:[%s3 + $0x14] sm:$0xf]
      %v639 = vld [vmem:[%s3 + $0x18] sm:$0xf]
      %v640 = vld [vmem:[%s3 + $0x1c] sm:$0xf]
      %v641 = vld [vmem:[%s3 + $0x20] sm:$0xf]
      %v642 = vld [vmem:[%s4] sm:$0x1]
      %v644 = vlaneseq
      %v645 = vshrl.u32 %v644, 7
      %v646 = vsub.s32 0, %v645
      %v647 = vrot.slane %v642, %v646
      %v658 = vunpack.c.l.b16 %v633
      %v659 = vunpack.c.l.b16 %v634
      %v660 = vunpack.c.l.b16 %v635
      %v661 = vunpack.c.l.b16 %v636
      %v662 = vunpack.c.l.b16 %v637
      %v663 = vunpack.c.l.b16 %v638
      %v664 = vunpack.c.l.b16 %v639
      %v665 = vunpack.c.l.b16 %v640
      %v666 = vunpack.c.l.b16 %v641
      %v667 = vpack.c.b16 %v659, %v658
      %v668 = vpack.c.b16 %v661, %v660
      %v669 = vpack.c.b16 %v663, %v662
      %v670 = vpack.c.b16 %v665, %v664
      %v671 = vpack.c.b16 %v666, %v666
      %vm676 = vcmask 588800
      %v677 = vsel %vm676, %v626, 0
      %v679 = vsel %vm676, %v628, 0
      %v681 = vsel %vm676, %v630, 0
      %v683 = vsel %vm676, %v632, 0
      %vm685 = vcmask 1043456
      %v687 = vsel %vm685, %v671, 0
      %689 = vmatprep.subr.bf16.mxu0 0
      %690 = vmatpush1.bf16.msra.mxu0 %v667
      %691 = vmatprep.subr.bf16.mxu0 0
      %692 = vmatpush1.bf16.msra.mxu0 %v668
      %693 = vmatprep.subr.bf16.mxu0 0
      %694 = vmatpush1.bf16.msra.mxu0 %v669
      %695 = vmatprep.subr.bf16.mxu0 0
      %696 = vmatpush1.bf16.msra.mxu0 %v670
      %697 = vmatprep.subr.bf16.mxu0 0
      %698 = vmatpush1.bf16.msra.mxu0 %v687
      %699 = vmatprep.subr.bf16.mxu0 0
      %700 = vmatpush1.bf16.msra.mxu0 0
      %701 = vmatprep.subr.bf16.mxu0 0
      %702 = vmatpush1.bf16.msra.mxu0 0
      %703 = vmatprep.subr.bf16.mxu0 0
      %704 = vmatpush1.bf16.msra.mxu0 0
      %705 = vmatprep.subr.bf16.mxu0 0
      %706 = vmatpush1.bf16.msra.mxu0 0
      %707 = vmatprep.subr.bf16.mxu0 0
      %708 = vmatpush1.bf16.msra.mxu0 0
      %709 = vmatprep.subr.bf16.mxu0 0
      %710 = vmatpush1.bf16.msra.mxu0 0
      %711 = vmatprep.subr.bf16.mxu0 0
      %712 = vmatpush1.bf16.msra.mxu0 0
      %713 = vmatprep.subr.bf16.mxu0 0
      %714 = vmatpush1.bf16.msra.mxu0 0
      %715 = vmatprep.subr.bf16.mxu0 0
      %716 = vmatpush1.bf16.msra.mxu0 0
      %717 = vmatprep.subr.bf16.mxu0 0
      %718 = vmatpush1.bf16.msra.mxu0 0
      %719 = vmatprep.subr.bf16.mxu0 0
      %720 = vmatpush1.bf16.msra.mxu0 0
      %721 = vmatprep.mubr.bf16.mxu0 0
      %722 = vmatmul.mubr.bf16.gmra.mrb[0].mxu0 %v677
      %v723 = vpop.f32.mrb[0].mxu0
      %v724 = vadd.f32 %v647, %v723
      %v725 = vpop.f32.mrb[0].mxu0
      %v726 = vpop.f32.mrb[0].mxu0
      %v727 = vadd.f32 %v647, %v726
      %v728 = vpop.f32.mrb[0].mxu0
      %729 = vmatprep.mubr.bf16.mxu0 0
      %730 = vmatmul.mubr.bf16.gmra.mrb[0].mxu0 %v679
      %v731 = vpop.f32.mrb[0].mxu0
      %v732 = vadd.f32 %v647, %v731
      %v733 = vpop.f32.mrb[0].mxu0
      %v734 = vpop.f32.mrb[0].mxu0
      %v735 = vadd.f32 %v647, %v734
      %v736 = vpop.f32.mrb[0].mxu0
      %737 = vmatprep.mubr.bf16.mxu0 0
      %738 = vmatmul.mubr.bf16.gmra.mrb[0].mxu0 %v681
      %v739 = vpop.f32.mrb[0].mxu0
      %v740 = vadd.f32 %v647, %v739
      %v741 = vpop.f32.mrb[0].mxu0
      %v742 = vpop.f32.mrb[0].mxu0
      %v743 = vadd.f32 %v647, %v742
      %v744 = vpop.f32.mrb[0].mxu0
      %745 = vmatprep.mubr.bf16.mxu0 0
      %746 = vmatmul.mubr.bf16.gmra.mrb[0].mxu0 %v683
      %v747 = vpop.f32.mrb[0].mxu0
      %v748 = vadd.f32 %v647, %v747
      %v749 = vpop.f32.mrb[0].mxu0
      %v750 = vpop.f32.mrb[0].mxu0
      %v751 = vadd.f32 %v647, %v750
      %v752 = vpop.f32.mrb[0].mxu0
      %753 = vdwg.mxu0
      %754 = vst.msk [vmem:[%s391] sm:$0xff] %vm562, %v724
      %755 = vst.msk [vmem:[%s391 + $0x8] sm:$0xff] %vm562, %v727
      %756 = vst.msk [vmem:[%s391 + $0x10] sm:$0xff] %vm562, %v732
      %757 = vst.msk [vmem:[%s391 + $0x18] sm:$0xff] %vm562, %v735
      %758 = vst.msk [vmem:[%s391 + $0x20] sm:$0xff] %vm562, %v740
      %759 = vst.msk [vmem:[%s391 + $0x28] sm:$0xff] %vm562, %v743
      %760 = vst.msk [vmem:[%s391 + $0x30] sm:$0xff] %vm562, %v748
      %761 = vst.msk [vmem:[%s391 + $0x38] sm:$0xff] %vm562, %v751
      %s762 = smul.u32 4, %s21
      %p763 = scmp.lt.s32.totalorder %s20, 1
      %s764 = scalar_select %p763, %s20, 1
      %p765 = scmp.lt.s32.totalorder %s762, 15
      %s766 = scalar_select %p765, %s762, 15
      %s767 = smul.addr %s766, 2
      %s768 = smul.addr %s764, 32
      %s769 = sadd.s32 %s767, %s768
      %s770 = smul.addr %s769, 8
      %s771 = scalar_lea.vmem %s5, %s770
      // Predicated region
      $region41: #{depthwise_separable_conv.1} parent=39 // pred_check
        %p772 = pneg %p190
      $region42: #{depthwise_separable_conv.1} parent=39 // pred_check_branch
        %774 = sbr.rel (%p772) target = $region44
      $region43: #{depthwise_separable_conv.1} parent=39 // pred_region
        %s775 = smul.u32 4, %s21
      $region44: #{depthwise_separable_conv.1} parent=39 // pred_fallthru
        _
    $region40: #{depthwise_separable_conv.1} parent=5 // pred_fallthru
      _
    %p776 = scmp.le.s32.totalorder 2, %s11
    // Predicated region
    $region45: #{depthwise_separable_conv.1} parent=5 // pred_check
      %p777 = pneg %p776
    $region46: #{depthwise_separable_conv.1} parent=5 // pred_check_branch
      %779 = sbr.rel (%p777) target = $region48
    $region47: #{depthwise_separable_conv.1} parent=5 // pred_region
      %s780 = ssub.s32 %s11, 2
      // Predicated region
      $region49: #{depthwise_separable_conv.1} parent=47 // pred_check
        %p781 = pneg %p196
      $region50: #{depthwise_separable_conv.1} parent=47 // pred_check_branch
        %783 = sbr.rel (%p781) target = $region52
      $region51: #{depthwise_separable_conv.1} parent=47 // pred_region
        %s784 = smul.u32 4, %s23
        %p785 = scmp.lt.s32.totalorder %s22, 1
        %s786 = scalar_select %p785, %s22, 1
        %p787 = scmp.lt.s32.totalorder %s784, 15
        %s788 = scalar_select %p787, %s784, 15
        %s789 = smul.addr %s788, 2
        %s790 = smul.addr %s786, 32
        %s791 = sadd.s32 %s789, %s790
        %s792 = smul.addr %s791, 8
        %s793 = scalar_lea.vmem %s5, %s792
      $region52: #{depthwise_separable_conv.1} parent=47 // pred_fallthru
        _
    $region48: #{depthwise_separable_conv.1} parent=5 // pred_fallthru
      _
  $region6: #{depthwise_separable_conv.1} parent=0 // loop_footer
    %s15 = sadd.s32 1, %s11
  $region7: #{depthwise_separable_conv.1} parent=0 // loop_footer_branch
    %10 = sbr.rel target = $region3
  $region8: #{depthwise_separable_conv.1} parent=0 // loop_exit
    _

</llo_original>
